<compile_context>
chip_gen: v7x
topology: tpu7x:2x2x1
jax: 0.10.0
libtpu: 0.0.40
codegen_flags: <defaults>
</compile_context>

<pallas_src>
import functools

import numpy as np
import jax
import jax.numpy as jnp
from jax.experimental import pallas as pl
from jax.experimental.pallas import tpu as pltpu

LANE = 128
SUBLANE = 8


def _rup(n, m):
    return ((n + m - 1) // m) * m


def _pad_to(a, axis, target):
    pad = target - a.shape[axis]
    if pad == 0:
        return a
    widths = [(0, 0)] * a.ndim
    widths[axis] = (0, pad)
    return jnp.pad(a, widths)


def beam_classifier_kernel(x_ref, wcbr_ref, wcbi_ref, w1_ref, w2_ref, w3_ref,
                           b_ref, out_ref, *, h1, h2, n_out):
    x = x_ref[...]                                              # (TB, Ap)  compute dtype

    # Trainable codebook split into real/imag halves -> two lane-dense dots (no slicing).
    bf_r = jnp.dot(x, wcbr_ref[...], preferred_element_type=jnp.float32)   # (TB, Wp)
    bf_i = jnp.dot(x, wcbi_ref[...], preferred_element_type=jnp.float32)   # (TB, Wp)

    # ComputePower: real^2 + imag^2 per wide beam, then relu.
    power = bf_r * bf_r + bf_i * bf_i
    h = jnp.maximum(power, 0.0)

    # Biases live in one concatenated (1, h1+h2+n_out) f32 ref; slices land on 128-lane
    # boundaries since every padded width is a multiple of 128.
    b1 = b_ref[:, 0:h1]
    b2 = b_ref[:, h1:h1 + h2]
    b3 = b_ref[:, h1 + h2:h1 + h2 + n_out]

    # dense1 + relu
    h = jnp.dot(h.astype(w1_ref.dtype), w1_ref[...],
                preferred_element_type=jnp.float32) + b1
    h = jnp.maximum(h, 0.0)

    # dense2 + relu
    h = jnp.dot(h.astype(w2_ref.dtype), w2_ref[...],
                preferred_element_type=jnp.float32) + b2
    h = jnp.maximum(h, 0.0)

    # dense3 (no activation, softmax not applied in forward)
    out = jnp.dot(h.astype(w3_ref.dtype), w3_ref[...],
                  preferred_element_type=jnp.float32) + b3
    out_ref[...] = out.astype(out_ref.dtype)


def beam_classifier_forward(x, w_cb, w1, b1, w2, b2, w3, b3,
                            *, tile_b=256, use_bf16=True):
    """x: (B, 2A) f32, w_cb: (2A, 2W), w1:(W,2W), w2:(2W,3W), w3:(3W,N); b*: (1, fan_out)."""
    batch, two_a = x.shape
    W = w1.shape[0]
    H1, H2, n_narrow = w1.shape[1], w2.shape[1], w3.shape[1]

    # Lane-aligned (128-multiple) padded widths.
    Ap = _rup(two_a, LANE)
    Wp = _rup(W, LANE)
    H1p = _rup(H1, LANE)
    H2p = _rup(H2, LANE)
    Np = _rup(n_narrow, LANE)

    compute_dtype = jnp.bfloat16 if use_bf16 else jnp.float32

    # Split the block-matrix codebook into real/imag column halves and zero-pad.
    w_cb_r = _pad_to(_pad_to(w_cb[:, :W], 1, Wp), 0, Ap).astype(compute_dtype)
    w_cb_i = _pad_to(_pad_to(w_cb[:, W:], 1, Wp), 0, Ap).astype(compute_dtype)

    w1p = _pad_to(_pad_to(w1, 0, Wp), 1, H1p).astype(compute_dtype)
    w2p = _pad_to(_pad_to(w2, 0, H1p), 1, H2p).astype(compute_dtype)
    w3p = _pad_to(_pad_to(w3, 0, H2p), 1, Np).astype(compute_dtype)

    # Single concatenated lane-dense bias ref (stays f32).
    b_all = jnp.concatenate(
        [_pad_to(b1, 1, H1p), _pad_to(b2, 1, H2p), _pad_to(b3, 1, Np)],
        axis=1).astype(jnp.float32)                              # (1, H1p+H2p+Np)

    # Batch tiling: pad batch to a multiple of the tile (tile itself a sublane multiple).
    tb = min(_rup(tile_b, SUBLANE), _rup(batch, SUBLANE))
    b_pad = _rup(batch, tb)
    x_p = _pad_to(_pad_to(x, 1, Ap), 0, b_pad).astype(compute_dtype)

    grid = (b_pad // tb,)

    def weight_spec(arr):
        return pl.BlockSpec(arr.shape, lambda i: (0,) * arr.ndim)

    # Advisory cost estimate for the XLA scheduler.
    mm_elems = Ap * Wp * 2 + Wp * H1p + H1p * H2p + H2p * Np
    itemsize = 2 if use_bf16 else 4
    cost = pl.CostEstimate(
        flops=int(2 * b_pad * mm_elems),
        transcendentals=0,
        bytes_accessed=int(b_pad * Ap * itemsize + b_pad * Np * 4
                           + mm_elems * itemsize + (H1p + H2p + Np) * 4),
    )

    out_padded = pl.pallas_call(
        functools.partial(beam_classifier_kernel, h1=H1p, h2=H2p, n_out=Np),
        out_shape=jax.ShapeDtypeStruct((b_pad, Np), jnp.float32),
        grid_spec=pltpu.PrefetchScalarGridSpec(
            num_scalar_prefetch=0,
            grid=grid,
            in_specs=[
                pl.BlockSpec((tb, Ap), lambda i: (i, 0)),        # x tile (pipelined)
                weight_spec(w_cb_r),                             # VMEM-resident weights
                weight_spec(w_cb_i),
                weight_spec(w1p),
                weight_spec(w2p),
                weight_spec(w3p),
                weight_spec(b_all),
            ],
            out_specs=pl.BlockSpec((tb, Np), lambda i: (i, 0)),
        ),
        compiler_params=pltpu.CompilerParams(
            dimension_semantics=("parallel",)),                  # megacore on v7x
        cost_estimate=cost,
    )(x_p, w_cb_r, w_cb_i, w1p, w2p, w3p, b_all)

    # Strip batch/feature padding.
    return out_padded[:batch, :n_narrow]


def make_params(key, n_antenna, n_wide_beam, n_narrow_beam):
    """Deterministic synthetic parameters matching the module's __init__ shapes."""
    k_theta, k1, k2, k3, kb1, kb2, kb3 = jax.random.split(key, 7)
    scale = np.sqrt(n_antenna).astype(np.float32)

    # PhaseShifter: theta (n_wide_beam, n_antenna), uniform [0, 2*pi)
    theta = jax.random.uniform(k_theta, (n_wide_beam, n_antenna),
                               jnp.float32, 0.0, 2.0 * np.pi)
    real_k = jnp.cos(theta) / scale                              # (W, A)
    imag_k = jnp.sin(theta) / scale
    # beam_weights = [[real, -imag], [imag, real]] -> (2W, 2A); F.linear => x @ beam_weights.T
    beam_weights = jnp.concatenate(
        [jnp.concatenate([real_k, -imag_k], axis=1),
         jnp.concatenate([imag_k, real_k], axis=1)], axis=0)
    w_cb = beam_weights.T                                        # (2A, 2W)

    def linear(kw, kb, fan_in, fan_out):
        bound = 1.0 / np.sqrt(fan_in)
        w = jax.random.uniform(kw, (fan_in, fan_out), jnp.float32, -bound, bound)
        b = jax.random.uniform(kb, (1, fan_out), jnp.float32, -bound, bound)
        return w, b

    w1, b1 = linear(k1, kb1, n_wide_beam, 2 * n_wide_beam)
    w2, b2 = linear(k2, kb2, 2 * n_wide_beam, 3 * n_wide_beam)
    w3, b3 = linear(k3, kb3, 3 * n_wide_beam, n_narrow_beam)
    return w_cb, w1, b1, w2, b2, w3, b3


if __name__ == "__main__":
    n_antenna = 64
    n_wide_beam = 32
    n_narrow_beam = 64
    batch = 8

    key = jax.random.PRNGKey(0)
    k_x, k_p = jax.random.split(key)

    # x: (batch, 2*n_antenna) = concatenated real/imag channel vector
    x = jax.random.normal(k_x, (batch, 2 * n_antenna), jnp.float32)
    params = make_params(k_p, n_antenna, n_wide_beam, n_narrow_beam)

    out = beam_classifier_forward(x, *params)
    jax.block_until_ready(out)

    # Pure-JAX f32 reference of the same math (kernel uses bf16 MXU path -> looser tol).
    w_cb, w1, b1, w2, b2, w3, b3 = params
    bf = x @ w_cb
    power = bf[:, :n_wide_beam] ** 2 + bf[:, n_wide_beam:] ** 2
    h = jnp.maximum(power, 0.0)
    h = jnp.maximum(h @ w1 + b1, 0.0)
    h = jnp.maximum(h @ w2 + b2, 0.0)
    ref = h @ w3 + b3
    np.testing.assert_allclose(np.asarray(out), np.asarray(ref), rtol=3e-2, atol=2e-2)

    assert out.shape == (batch, n_narrow_beam)
    print("KERNEL_OK")
</pallas_src>

<mosaic_0001>
module attributes {stable_mosaic.version = 11 : i64} {
  func.func @beam_classifier_kernel(%arg0: i32, %arg1: memref<8x128xbf16, #tpu.memory_space<vmem>>, %arg2: memref<128x128xbf16, #tpu.memory_space<vmem>>, %arg3: memref<128x128xbf16, #tpu.memory_space<vmem>>, %arg4: memref<128x128xbf16, #tpu.memory_space<vmem>>, %arg5: memref<128x128xbf16, #tpu.memory_space<vmem>>, %arg6: memref<128x128xbf16, #tpu.memory_space<vmem>>, %arg7: memref<1x384xf32, #tpu.memory_space<vmem>>, %arg8: memref<8x128xf32, #tpu.memory_space<vmem>>) attributes {dimension_semantics = [#tpu.dimension_semantics<parallel>], iteration_bounds = array<i64: 1>, scalar_prefetch = 0 : i64, scratch_operands = 0 : i64, tpu.core_type = #tpu.core_type<tc>, window_params = [{transform_indices = @transform_0, window_bounds = array<i64: 8, 128>}, {pipeline_mode = #tpu.pipeline_mode<synchronous>, transform_indices = @transform_1, window_bounds = array<i64: 128, 128>}, {pipeline_mode = #tpu.pipeline_mode<synchronous>, transform_indices = @transform_2, window_bounds = array<i64: 128, 128>}, {pipeline_mode = #tpu.pipeline_mode<synchronous>, transform_indices = @transform_3, window_bounds = array<i64: 128, 128>}, {pipeline_mode = #tpu.pipeline_mode<synchronous>, transform_indices = @transform_4, window_bounds = array<i64: 128, 128>}, {pipeline_mode = #tpu.pipeline_mode<synchronous>, transform_indices = @transform_5, window_bounds = array<i64: 128, 128>}, {pipeline_mode = #tpu.pipeline_mode<synchronous>, transform_indices = @transform_6, window_bounds = array<i64: 1, 384>}, {transform_indices = @transform_7, window_bounds = array<i64: 8, 128>}]} {
    %c0 = arith.constant 0 : index
    %c0_0 = arith.constant 0 : index
    %0 = vector.load %arg1[%c0, %c0_0] : memref<8x128xbf16, #tpu.memory_space<vmem>>, vector<8x128xbf16>
    %c0_1 = arith.constant 0 : index
    %c0_2 = arith.constant 0 : index
    %1 = vector.load %arg2[%c0_1, %c0_2] : memref<128x128xbf16, #tpu.memory_space<vmem>>, vector<128x128xbf16>
    %cst = arith.constant dense<0.000000e+00> : vector<8x128xf32>
    %2 = tpu.matmul %0, %1, %cst {dimension_numbers = #tpu.dot_dimension_numbers<[1], [0], [0], [1], [0, 0, 1, 1], [], []>} : vector<8x128xbf16>, vector<128x128xbf16>, vector<8x128xf32> -> vector<8x128xf32>
    %c0_3 = arith.constant 0 : index
    %c0_4 = arith.constant 0 : index
    %3 = vector.load %arg3[%c0_3, %c0_4] : memref<128x128xbf16, #tpu.memory_space<vmem>>, vector<128x128xbf16>
    %cst_5 = arith.constant dense<0.000000e+00> : vector<8x128xf32>
    %4 = tpu.matmul %0, %3, %cst_5 {dimension_numbers = #tpu.dot_dimension_numbers<[1], [0], [0], [1], [0, 0, 1, 1], [], []>} : vector<8x128xbf16>, vector<128x128xbf16>, vector<8x128xf32> -> vector<8x128xf32>
    %5 = arith.mulf %2, %2 : vector<8x128xf32>
    %6 = arith.mulf %4, %4 : vector<8x128xf32>
    %7 = arith.addf %5, %6 : vector<8x128xf32>
    %cst_6 = arith.constant 0.000000e+00 : f32
    %8 = vector.broadcast %cst_6 : f32 to vector<8x128xf32>
    %9 = arith.maximumf %7, %8 : vector<8x128xf32>
    %c0_7 = arith.constant 0 : index
    %c0_8 = arith.constant 0 : index
    %10 = vector.load %arg7[%c0_7, %c0_8] : memref<1x384xf32, #tpu.memory_space<vmem>>, vector<1x128xf32>
    %c0_9 = arith.constant 0 : index
    %c128 = arith.constant 128 : index
    %11 = vector.load %arg7[%c0_9, %c128] : memref<1x384xf32, #tpu.memory_space<vmem>>, vector<1x128xf32>
    %c0_10 = arith.constant 0 : index
    %c256 = arith.constant 256 : index
    %12 = vector.load %arg7[%c0_10, %c256] : memref<1x384xf32, #tpu.memory_space<vmem>>, vector<1x128xf32>
    %13 = arith.truncf %9 : vector<8x128xf32> to vector<8x128xbf16>
    %c0_11 = arith.constant 0 : index
    %c0_12 = arith.constant 0 : index
    %14 = vector.load %arg4[%c0_11, %c0_12] : memref<128x128xbf16, #tpu.memory_space<vmem>>, vector<128x128xbf16>
    %cst_13 = arith.constant dense<0.000000e+00> : vector<8x128xf32>
    %15 = tpu.matmul %13, %14, %cst_13 {dimension_numbers = #tpu.dot_dimension_numbers<[1], [0], [0], [1], [0, 0, 1, 1], [], []>} : vector<8x128xbf16>, vector<128x128xbf16>, vector<8x128xf32> -> vector<8x128xf32>
    %16 = vector.broadcast %10 : vector<1x128xf32> to vector<8x128xf32>
    %17 = arith.addf %15, %16 : vector<8x128xf32>
    %cst_14 = arith.constant 0.000000e+00 : f32
    %18 = vector.broadcast %cst_14 : f32 to vector<8x128xf32>
    %19 = arith.maximumf %17, %18 : vector<8x128xf32>
    %20 = arith.truncf %19 : vector<8x128xf32> to vector<8x128xbf16>
    %c0_15 = arith.constant 0 : index
    %c0_16 = arith.constant 0 : index
    %21 = vector.load %arg5[%c0_15, %c0_16] : memref<128x128xbf16, #tpu.memory_space<vmem>>, vector<128x128xbf16>
    %cst_17 = arith.constant dense<0.000000e+00> : vector<8x128xf32>
    %22 = tpu.matmul %20, %21, %cst_17 {dimension_numbers = #tpu.dot_dimension_numbers<[1], [0], [0], [1], [0, 0, 1, 1], [], []>} : vector<8x128xbf16>, vector<128x128xbf16>, vector<8x128xf32> -> vector<8x128xf32>
    %23 = vector.broadcast %11 : vector<1x128xf32> to vector<8x128xf32>
    %24 = arith.addf %22, %23 : vector<8x128xf32>
    %cst_18 = arith.constant 0.000000e+00 : f32
    %25 = vector.broadcast %cst_18 : f32 to vector<8x128xf32>
    %26 = arith.maximumf %24, %25 : vector<8x128xf32>
    %27 = arith.truncf %26 : vector<8x128xf32> to vector<8x128xbf16>
    %c0_19 = arith.constant 0 : index
    %c0_20 = arith.constant 0 : index
    %28 = vector.load %arg6[%c0_19, %c0_20] : memref<128x128xbf16, #tpu.memory_space<vmem>>, vector<128x128xbf16>
    %cst_21 = arith.constant dense<0.000000e+00> : vector<8x128xf32>
    %29 = tpu.matmul %27, %28, %cst_21 {dimension_numbers = #tpu.dot_dimension_numbers<[1], [0], [0], [1], [0, 0, 1, 1], [], []>} : vector<8x128xbf16>, vector<128x128xbf16>, vector<8x128xf32> -> vector<8x128xf32>
    %30 = vector.broadcast %12 : vector<1x128xf32> to vector<8x128xf32>
    %31 = arith.addf %29, %30 : vector<8x128xf32>
    %c0_22 = arith.constant 0 : index
    %c0_23 = arith.constant 0 : index
    %32 = vector.load %arg8[%c0_22, %c0_23] : memref<8x128xf32, #tpu.memory_space<vmem>>, vector<8x128xf32>
    tpu.vector_store %arg8[%c0_22, %c0_23], %31 {strides = array<i32>} : memref<8x128xf32, #tpu.memory_space<vmem>>, vector<8x128xf32>,
    return
  }
  func.func @transform_0(%arg0: i32) -> (i32, i32) {
    %c0_i32 = arith.constant 0 : i32
    %c0_i32_0 = arith.constant 0 : i32
    return %arg0, %c0_i32 : i32, i32
  }
  func.func @transform_1(%arg0: i32) -> (i32, i32) {
    %c0_i32 = arith.constant 0 : i32
    %c0_i32_0 = arith.constant 0 : i32
    %c0_i32_1 = arith.constant 0 : i32
    return %c0_i32, %c0_i32_0 : i32, i32
  }
  func.func @transform_2(%arg0: i32) -> (i32, i32) {
    %c0_i32 = arith.constant 0 : i32
    %c0_i32_0 = arith.constant 0 : i32
    %c0_i32_1 = arith.constant 0 : i32
    return %c0_i32, %c0_i32_0 : i32, i32
  }
  func.func @transform_3(%arg0: i32) -> (i32, i32) {
    %c0_i32 = arith.constant 0 : i32
    %c0_i32_0 = arith.constant 0 : i32
    %c0_i32_1 = arith.constant 0 : i32
    return %c0_i32, %c0_i32_0 : i32, i32
  }
  func.func @transform_4(%arg0: i32) -> (i32, i32) {
    %c0_i32 = arith.constant 0 : i32
    %c0_i32_0 = arith.constant 0 : i32
    %c0_i32_1 = arith.constant 0 : i32
    return %c0_i32, %c0_i32_0 : i32, i32
  }
  func.func @transform_5(%arg0: i32) -> (i32, i32) {
    %c0_i32 = arith.constant 0 : i32
    %c0_i32_0 = arith.constant 0 : i32
    %c0_i32_1 = arith.constant 0 : i32
    return %c0_i32, %c0_i32_0 : i32, i32
  }
  func.func @transform_6(%arg0: i32) -> (i32, i32) {
    %c0_i32 = arith.constant 0 : i32
    %c0_i32_0 = arith.constant 0 : i32
    %c0_i32_1 = arith.constant 0 : i32
    return %c0_i32, %c0_i32_0 : i32, i32
  }
  func.func @transform_7(%arg0: i32) -> (i32, i32) {
    %c0_i32 = arith.constant 0 : i32
    %c0_i32_0 = arith.constant 0 : i32
    return %arg0, %c0_i32 : i32, i32
  }
}

</mosaic_0001>

<llo_original>
// kernel: tpu_custom_call.1
$region0: #{tpu_custom_call.1}
  #allocation0 [shape = 'u32[]', space=smem, size = 0x4, offset = 0x4, fixed_abs, tag = 'smem constant byte address 0x4 - core index']
  #allocation1 [shape = 'u32[144,128]{1,0:T(1,128)}', space=vmem, size = 0x12000, scoped, tag = 'internal scratch']
  %s0 = inlined_call_operand.hbm [shape: bf16[8,128], index: 0, kind: input, shape index: {}]
  %s1 = inlined_call_operand.hbm [shape: bf16[128,128], index: 1, kind: input, shape index: {}]
  %s2 = inlined_call_operand.hbm [shape: bf16[128,128], index: 2, kind: input, shape index: {}]
  %s3 = inlined_call_operand.hbm [shape: bf16[128,128], index: 3, kind: input, shape index: {}]
  %s4 = inlined_call_operand.hbm [shape: bf16[128,128], index: 4, kind: input, shape index: {}]
  %s5 = inlined_call_operand.hbm [shape: bf16[128,128], index: 5, kind: input, shape index: {}]
  %s6 = inlined_call_operand.vmem [shape: f32[1,384], index: 6, kind: input, shape index: {}]
  %s7 = inlined_call_operand.hbm [shape: f32[8,128], index: 7, kind: output, shape index: {}]
  %s8 = sld [smem:[#allocation0]]
  $region62: #{tpu_custom_call.1} parent=0
    _
  %s10 = ssub.s32 1, %s8
  %s11 = scalar_select 0, %s10, %s8
  $region1: #{tpu_custom_call.1} parent=0
    #allocation2 [shape = 'u8[2048]{0}', space=vmem, size = 0x800, scoped, tag = 'input window, operand 0, single buffered']
    #allocation3 [shape = 's32[1]{0}', space=sflag, size = 0x4, scoped, tag = 'scoped memory for tpu_custom_call.1']
    #allocation4 [shape = 's32[1]{0}', space=sflag, size = 0x4, scoped, tag = 'scoped memory for tpu_custom_call.1']
    #allocation5 [shape = 'u8[32768]{0}', space=vmem, size = 0x8000, scoped, tag = 'input window, operand 1, single buffered']
    #allocation6 [shape = 's32[1]{0}', space=sflag, size = 0x4, scoped, tag = 'scoped memory for tpu_custom_call.1']
    #allocation7 [shape = 'u8[32768]{0}', space=vmem, size = 0x8000, scoped, tag = 'input window, operand 2, single buffered']
    #allocation8 [shape = 'u8[32768]{0}', space=vmem, size = 0x8000, scoped, tag = 'input window, operand 3, single buffered']
    #allocation9 [shape = 's32[1]{0}', space=sflag, size = 0x4, scoped, tag = 'scoped memory for tpu_custom_call.1']
    #allocation10 [shape = 'u8[32768]{0}', space=vmem, size = 0x8000, scoped, tag = 'input window, operand 4, single buffered']
    #allocation11 [shape = 'u8[32768]{0}', space=vmem, size = 0x8000, scoped, tag = 'input window, operand 5, single buffered']
    #allocation12 [shape = 's32[1]{0}', space=sflag, size = 0x4, scoped, tag = 'scoped memory for tpu_custom_call.1']
    #allocation13 [shape = 'u8[4096]{0}', space=vmem, size = 0x1000, scoped, tag = 'output window, operand 0, single buffered']
    %12 = vsyncpa [#allocation3], 0
    %13 = vsyncpa [#allocation6], 0
    %14 = vsyncpa [#allocation9], 0
    %15 = vsyncpa [#allocation12], 0
    %16 = vsyncpa [#allocation4], 0
    // Predicated region
    $region2: #{tpu_custom_call.1} parent=1 // pred_check
      _
    $region3: #{tpu_custom_call.1} parent=1 // pred_check_branch
      %18 = sbr.rel (0) target = $region5
    $region4: #{tpu_custom_call.1} parent=1 // pred_region
      %s20 = ssub.s32 64, 64
      %21 = vsyncadd [#allocation3], %s20
      %s23 = sshll.u32 [#allocation2], 4
      %s24 = int_to_ptr.vmem [resolvable:$true] %s23
      %26 = dma.hbm_to_vmem [thread:$0]  %s0, 64, %s24, [#allocation3]
    $region5: #{tpu_custom_call.1} parent=1 // pred_fallthru
      _
    // Predicated region
    $region6: #{tpu_custom_call.1} parent=1 // pred_check
      _
    $region7: #{tpu_custom_call.1} parent=1 // pred_check_branch
      %28 = sbr.rel (0) target = $region9
    $region8: #{tpu_custom_call.1} parent=1 // pred_region
      %s30 = ssub.s32 1024, 1024
      %31 = vsyncadd [#allocation6], %s30
      %s32 = sshll.u32 [#allocation5], 4
      %s33 = int_to_ptr.vmem [resolvable:$true] %s32
      %38 = dma.hbm_to_vmem [thread:$0]  %s1, 1024, %s33, [#allocation6], 64, 64, 4
    $region9: #{tpu_custom_call.1} parent=1 // pred_fallthru
      _
    // Predicated region
    $region10: #{tpu_custom_call.1} parent=1 // pred_check
      _
    $region11: #{tpu_custom_call.1} parent=1 // pred_check_branch
      %40 = sbr.rel (0) target = $region13
    $region12: #{tpu_custom_call.1} parent=1 // pred_region
      %s42 = ssub.s32 1024, 1024
      %43 = vsyncadd [#allocation6], %s42
      %s44 = sshll.u32 [#allocation7], 4
      %s45 = int_to_ptr.vmem [resolvable:$true] %s44
      %50 = dma.hbm_to_vmem [thread:$0]  %s2, 1024, %s45, [#allocation6], 64, 64, 4
    $region13: #{tpu_custom_call.1} parent=1 // pred_fallthru
      _
    // Predicated region
    $region14: #{tpu_custom_call.1} parent=1 // pred_check
      _
    $region15: #{tpu_custom_call.1} parent=1 // pred_check_branch
      %52 = sbr.rel (0) target = $region17
    $region16: #{tpu_custom_call.1} parent=1 // pred_region
      %s54 = ssub.s32 1024, 1024
      %55 = vsyncadd [#allocation9], %s54
      %s56 = sshll.u32 [#allocation8], 4
      %s57 = int_to_ptr.vmem [resolvable:$true] %s56
      %62 = dma.hbm_to_vmem [thread:$0]  %s3, 1024, %s57, [#allocation9], 64, 64, 4
    $region17: #{tpu_custom_call.1} parent=1 // pred_fallthru
      _
    // Predicated region
    $region18: #{tpu_custom_call.1} parent=1 // pred_check
      _
    $region19: #{tpu_custom_call.1} parent=1 // pred_check_branch
      %64 = sbr.rel (0) target = $region21
    $region20: #{tpu_custom_call.1} parent=1 // pred_region
      %s66 = ssub.s32 1024, 1024
      %67 = vsyncadd [#allocation9], %s66
      %s68 = sshll.u32 [#allocation10], 4
      %s69 = int_to_ptr.vmem [resolvable:$true] %s68
      %74 = dma.hbm_to_vmem [thread:$0]  %s4, 1024, %s69, [#allocation9], 64, 64, 4
    $region21: #{tpu_custom_call.1} parent=1 // pred_fallthru
      _
    // Predicated region
    $region22: #{tpu_custom_call.1} parent=1 // pred_check
      _
    $region23: #{tpu_custom_call.1} parent=1 // pred_check_branch
      %76 = sbr.rel (0) target = $region25
    $region24: #{tpu_custom_call.1} parent=1 // pred_region
      %s78 = ssub.s32 1024, 1024
      %79 = vsyncadd [#allocation12], %s78
      %s80 = sshll.u32 [#allocation11], 4
      %s81 = int_to_ptr.vmem [resolvable:$true] %s80
      %86 = dma.hbm_to_vmem [thread:$0]  %s5, 1024, %s81, [#allocation12], 64, 64, 4
    $region25: #{tpu_custom_call.1} parent=1 // pred_fallthru
      _
    // Predicated region
    $region26: #{tpu_custom_call.1} parent=1 // pred_check
      _
    $region27: #{tpu_custom_call.1} parent=1 // pred_check_branch
      %88 = sbr.rel (0) target = $region29
    $region28: #{tpu_custom_call.1} parent=1 // pred_region
      _
    $region29: #{tpu_custom_call.1} parent=1 // pred_fallthru
      _
    // Predicated region
    $region30: #{tpu_custom_call.1} parent=1 // pred_check
      _
    $region31: #{tpu_custom_call.1} parent=1 // pred_check_branch
      %90 = sbr.rel (0) target = $region33
    $region32: #{tpu_custom_call.1} parent=1 // pred_region
      %91 = dma.done [#allocation3], 64
    $region33: #{tpu_custom_call.1} parent=1 // pred_fallthru
      _
    // Predicated region
    $region34: #{tpu_custom_call.1} parent=1 // pred_check
      _
    $region35: #{tpu_custom_call.1} parent=1 // pred_check_branch
      %93 = sbr.rel (0) target = $region37
    $region36: #{tpu_custom_call.1} parent=1 // pred_region
      %94 = dma.done [#allocation6], 1024
    $region37: #{tpu_custom_call.1} parent=1 // pred_fallthru
      _
    // Predicated region
    $region38: #{tpu_custom_call.1} parent=1 // pred_check
      _
    $region39: #{tpu_custom_call.1} parent=1 // pred_check_branch
      %96 = sbr.rel (0) target = $region41
    $region40: #{tpu_custom_call.1} parent=1 // pred_region
      %97 = dma.done [#allocation6], 1024
    $region41: #{tpu_custom_call.1} parent=1 // pred_fallthru
      _
    // Predicated region
    $region42: #{tpu_custom_call.1} parent=1 // pred_check
      _
    $region43: #{tpu_custom_call.1} parent=1 // pred_check_branch
      %99 = sbr.rel (0) target = $region45
    $region44: #{tpu_custom_call.1} parent=1 // pred_region
      %100 = dma.done [#allocation9], 1024
    $region45: #{tpu_custom_call.1} parent=1 // pred_fallthru
      _
    // Predicated region
    $region46: #{tpu_custom_call.1} parent=1 // pred_check
      _
    $region47: #{tpu_custom_call.1} parent=1 // pred_check_branch
      %102 = sbr.rel (0) target = $region49
    $region48: #{tpu_custom_call.1} parent=1 // pred_region
      %103 = dma.done [#allocation9], 1024
    $region49: #{tpu_custom_call.1} parent=1 // pred_fallthru
      _
    // Predicated region
    $region50: #{tpu_custom_call.1} parent=1 // pred_check
      _
    $region51: #{tpu_custom_call.1} parent=1 // pred_check_branch
      %105 = sbr.rel (0) target = $region53
    $region52: #{tpu_custom_call.1} parent=1 // pred_region
      %106 = dma.done [#allocation12], 1024
    $region53: #{tpu_custom_call.1} parent=1 // pred_fallthru
      _
    %v108 = vld [vmem:[#allocation2] sm:$0xf]
    %v109 = vld [vmem:[#allocation5] sm:$0xf]
    %v110 = vld [vmem:[#allocation5 + $0x4] sm:$0xf]
    %v111 = vld [vmem:[#allocation5 + $0x8] sm:$0xf]
    %v112 = vld [vmem:[#allocation5 + $0xc] sm:$0xf]
    %v113 = vld [vmem:[#allocation5 + $0x10] sm:$0xf]
    %v114 = vld [vmem:[#allocation5 + $0x14] sm:$0xf]
    %v115 = vld [vmem:[#allocation5 + $0x18] sm:$0xf]
    %v116 = vld [vmem:[#allocation5 + $0x1c] sm:$0xf]
    %v117 = vld [vmem:[#allocation5 + $0x20] sm:$0xf]
    %v118 = vld [vmem:[#allocation5 + $0x24] sm:$0xf]
    %v119 = vld [vmem:[#allocation5 + $0x28] sm:$0xf]
    %v120 = vld [vmem:[#allocation5 + $0x2c] sm:$0xf]
    %v121 = vld [vmem:[#allocation5 + $0x30] sm:$0xf]
    %v122 = vld [vmem:[#allocation5 + $0x34] sm:$0xf]
    %v123 = vld [vmem:[#allocation5 + $0x38] sm:$0xf]
    %v124 = vld [vmem:[#allocation5 + $0x3c] sm:$0xf]
    %v141 = vunpack.c.l.b16 %v109
    %v142 = vunpack.c.l.b16 %v110
    %v143 = vunpack.c.l.b16 %v111
    %v144 = vunpack.c.l.b16 %v112
    %v145 = vunpack.c.l.b16 %v113
    %v146 = vunpack.c.l.b16 %v114
    %v147 = vunpack.c.l.b16 %v115
    %v148 = vunpack.c.l.b16 %v116
    %v149 = vunpack.c.l.b16 %v117
    %v150 = vunpack.c.l.b16 %v118
    %v151 = vunpack.c.l.b16 %v119
    %v152 = vunpack.c.l.b16 %v120
    %v153 = vunpack.c.l.b16 %v121
    %v154 = vunpack.c.l.b16 %v122
    %v155 = vunpack.c.l.b16 %v123
    %v156 = vunpack.c.l.b16 %v124
    %v157 = vpack.c.b16 %v142, %v141
    %v158 = vpack.c.b16 %v144, %v143
    %v159 = vpack.c.b16 %v146, %v145
    %v160 = vpack.c.b16 %v148, %v147
    %v161 = vpack.c.b16 %v150, %v149
    %v162 = vpack.c.b16 %v152, %v151
    %v163 = vpack.c.b16 %v154, %v153
    %v164 = vpack.c.b16 %v156, %v155
    %173 = vmatprep.subr.bf16.mxu0 0
    %174 = vmatpush1.bf16.msra.mxu0 %v157
    %175 = vmatprep.subr.bf16.mxu0 0
    %176 = vmatpush1.bf16.msra.mxu0 %v158
    %177 = vmatprep.subr.bf16.mxu0 0
    %178 = vmatpush1.bf16.msra.mxu0 %v159
    %179 = vmatprep.subr.bf16.mxu0 0
    %180 = vmatpush1.bf16.msra.mxu0 %v160
    %181 = vmatprep.subr.bf16.mxu0 0
    %182 = vmatpush1.bf16.msra.mxu0 %v161
    %183 = vmatprep.subr.bf16.mxu0 0
    %184 = vmatpush1.bf16.msra.mxu0 %v162
    %185 = vmatprep.subr.bf16.mxu0 0
    %186 = vmatpush1.bf16.msra.mxu0 %v163
    %187 = vmatprep.subr.bf16.mxu0 0
    %188 = vmatpush1.bf16.msra.mxu0 %v164
    %189 = vmatprep.subr.bf16.mxu0 0
    %190 = vmatpush1.bf16.msra.mxu0 0
    %191 = vmatprep.subr.bf16.mxu0 0
    %192 = vmatpush1.bf16.msra.mxu0 0
    %193 = vmatprep.subr.bf16.mxu0 0
    %194 = vmatpush1.bf16.msra.mxu0 0
    %195 = vmatprep.subr.bf16.mxu0 0
    %196 = vmatpush1.bf16.msra.mxu0 0
    %197 = vmatprep.subr.bf16.mxu0 0
    %198 = vmatpush1.bf16.msra.mxu0 0
    %199 = vmatprep.subr.bf16.mxu0 0
    %200 = vmatpush1.bf16.msra.mxu0 0
    %201 = vmatprep.subr.bf16.mxu0 0
    %202 = vmatpush1.bf16.msra.mxu0 0
    %203 = vmatprep.subr.bf16.mxu0 0
    %204 = vmatpush1.bf16.msra.mxu0 0
    %205 = vmatprep.mubr.bf16.mxu0 0
    %206 = vmatmul.mubr.bf16.gmra.mrb[0].mxu0 %v108
    %v207 = vpop.f32.mrb[0].mxu0
    %v208 = vadd.f32 0.0, %v207
    %v209 = vpop.f32.mrb[0].mxu0
    %v210 = vpop.f32.mrb[0].mxu0
    %v211 = vpop.f32.mrb[0].mxu0
    %212 = vdwg.mxu0
    %v213 = vld [vmem:[#allocation7] sm:$0xf]
    %v214 = vld [vmem:[#allocation7 + $0x4] sm:$0xf]
    %v215 = vld [vmem:[#allocation7 + $0x8] sm:$0xf]
    %v216 = vld [vmem:[#allocation7 + $0xc] sm:$0xf]
    %v217 = vld [vmem:[#allocation7 + $0x10] sm:$0xf]
    %v218 = vld [vmem:[#allocation7 + $0x14] sm:$0xf]
    %v219 = vld [vmem:[#allocation7 + $0x18] sm:$0xf]
    %v220 = vld [vmem:[#allocation7 + $0x1c] sm:$0xf]
    %v221 = vld [vmem:[#allocation7 + $0x20] sm:$0xf]
    %v222 = vld [vmem:[#allocation7 + $0x24] sm:$0xf]
    %v223 = vld [vmem:[#allocation7 + $0x28] sm:$0xf]
    %v224 = vld [vmem:[#allocation7 + $0x2c] sm:$0xf]
    %v225 = vld [vmem:[#allocation7 + $0x30] sm:$0xf]
    %v226 = vld [vmem:[#allocation7 + $0x34] sm:$0xf]
    %v227 = vld [vmem:[#allocation7 + $0x38] sm:$0xf]
    %v228 = vld [vmem:[#allocation7 + $0x3c] sm:$0xf]
    %v245 = vunpack.c.l.b16 %v213
    %v246 = vunpack.c.l.b16 %v214
    %v247 = vunpack.c.l.b16 %v215
    %v248 = vunpack.c.l.b16 %v216
    %v249 = vunpack.c.l.b16 %v217
    %v250 = vunpack.c.l.b16 %v218
    %v251 = vunpack.c.l.b16 %v219
    %v252 = vunpack.c.l.b16 %v220
    %v253 = vunpack.c.l.b16 %v221
    %v254 = vunpack.c.l.b16 %v222
    %v255 = vunpack.c.l.b16 %v223
    %v256 = vunpack.c.l.b16 %v224
    %v257 = vunpack.c.l.b16 %v225
    %v258 = vunpack.c.l.b16 %v226
    %v259 = vunpack.c.l.b16 %v227
    %v260 = vunpack.c.l.b16 %v228
    %v261 = vpack.c.b16 %v246, %v245
    %v262 = vpack.c.b16 %v248, %v247
    %v263 = vpack.c.b16 %v250, %v249
    %v264 = vpack.c.b16 %v252, %v251
    %v265 = vpack.c.b16 %v254, %v253
    %v266 = vpack.c.b16 %v256, %v255
    %v267 = vpack.c.b16 %v258, %v257
    %v268 = vpack.c.b16 %v260, %v259
    %277 = vmatprep.subr.bf16.mxu0 0
    %278 = vmatpush1.bf16.msra.mxu0 %v261
    %279 = vmatprep.subr.bf16.mxu0 0
    %280 = vmatpush1.bf16.msra.mxu0 %v262
    %281 = vmatprep.subr.bf16.mxu0 0
    %282 = vmatpush1.bf16.msra.mxu0 %v263
    %283 = vmatprep.subr.bf16.mxu0 0
    %284 = vmatpush1.bf16.msra.mxu0 %v264
    %285 = vmatprep.subr.bf16.mxu0 0
    %286 = vmatpush1.bf16.msra.mxu0 %v265
    %287 = vmatprep.subr.bf16.mxu0 0
    %288 = vmatpush1.bf16.msra.mxu0 %v266
    %289 = vmatprep.subr.bf16.mxu0 0
    %290 = vmatpush1.bf16.msra.mxu0 %v267
    %291 = vmatprep.subr.bf16.mxu0 0
    %292 = vmatpush1.bf16.msra.mxu0 %v268
    %293 = vmatprep.subr.bf16.mxu0 0
    %294 = vmatpush1.bf16.msra.mxu0 0
    %295 = vmatprep.subr.bf16.mxu0 0
    %296 = vmatpush1.bf16.msra.mxu0 0
    %297 = vmatprep.subr.bf16.mxu0 0
    %298 = vmatpush1.bf16.msra.mxu0 0
    %299 = vmatprep.subr.bf16.mxu0 0
    %300 = vmatpush1.bf16.msra.mxu0 0
    %301 = vmatprep.subr.bf16.mxu0 0
    %302 = vmatpush1.bf16.msra.mxu0 0
    %303 = vmatprep.subr.bf16.mxu0 0
    %304 = vmatpush1.bf16.msra.mxu0 0
    %305 = vmatprep.subr.bf16.mxu0 0
    %306 = vmatpush1.bf16.msra.mxu0 0
    %307 = vmatprep.subr.bf16.mxu0 0
    %308 = vmatpush1.bf16.msra.mxu0 0
    %309 = vmatprep.mubr.bf16.mxu0 0
    %310 = vmatmul.mubr.bf16.gmra.mrb[0].mxu0 %v108
    %v311 = vpop.f32.mrb[0].mxu0
    %v312 = vadd.f32 0.0, %v311
    %v313 = vpop.f32.mrb[0].mxu0
    %v314 = vpop.f32.mrb[0].mxu0
    %v315 = vpop.f32.mrb[0].mxu0
    %316 = vdwg.mxu0
    %v317 = vmul.f32 %v208, %v208
    %v318 = vmul.f32 %v312, %v312
    %v319 = vadd.f32 %v317, %v318
    %v320 = vmax.f32 %v319, 0.0
    %v321 = vld [vmem:[%s6] sm:$0x1]
    %v322 = vld [vmem:[%s6 + $0x1] sm:$0x1]
    %v323 = vld [vmem:[%s6 + $0x2] sm:$0x1]
    %v324 = vpack.c.bf16 %v320, %v320
    %v325 = vld [vmem:[#allocation8] sm:$0xf]
    %v326 = vld [vmem:[#allocation8 + $0x4] sm:$0xf]
    %v327 = vld [vmem:[#allocation8 + $0x8] sm:$0xf]
    %v328 = vld [vmem:[#allocation8 + $0xc] sm:$0xf]
    %v329 = vld [vmem:[#allocation8 + $0x10] sm:$0xf]
    %v330 = vld [vmem:[#allocation8 + $0x14] sm:$0xf]
    %v331 = vld [vmem:[#allocation8 + $0x18] sm:$0xf]
    %v332 = vld [vmem:[#allocation8 + $0x1c] sm:$0xf]
    %v333 = vld [vmem:[#allocation8 + $0x20] sm:$0xf]
    %v334 = vld [vmem:[#allocation8 + $0x24] sm:$0xf]
    %v335 = vld [vmem:[#allocation8 + $0x28] sm:$0xf]
    %v336 = vld [vmem:[#allocation8 + $0x2c] sm:$0xf]
    %v337 = vld [vmem:[#allocation8 + $0x30] sm:$0xf]
    %v338 = vld [vmem:[#allocation8 + $0x34] sm:$0xf]
    %v339 = vld [vmem:[#allocation8 + $0x38] sm:$0xf]
    %v340 = vld [vmem:[#allocation8 + $0x3c] sm:$0xf]
    %v342 = vlaneseq
    %v343 = vshrl.u32 %v342, 7
    %v344 = vsub.s32 0, %v343
    %v345 = vrot.slane %v321, %v344
    %v363 = vunpack.c.l.b16 %v325
    %v364 = vunpack.c.l.b16 %v326
    %v365 = vunpack.c.l.b16 %v327
    %v366 = vunpack.c.l.b16 %v328
    %v367 = vunpack.c.l.b16 %v329
    %v368 = vunpack.c.l.b16 %v330
    %v369 = vunpack.c.l.b16 %v331
    %v370 = vunpack.c.l.b16 %v332
    %v371 = vunpack.c.l.b16 %v333
    %v372 = vunpack.c.l.b16 %v334
    %v373 = vunpack.c.l.b16 %v335
    %v374 = vunpack.c.l.b16 %v336
    %v375 = vunpack.c.l.b16 %v337
    %v376 = vunpack.c.l.b16 %v338
    %v377 = vunpack.c.l.b16 %v339
    %v378 = vunpack.c.l.b16 %v340
    %v379 = vpack.c.b16 %v364, %v363
    %v380 = vpack.c.b16 %v366, %v365
    %v381 = vpack.c.b16 %v368, %v367
    %v382 = vpack.c.b16 %v370, %v369
    %v383 = vpack.c.b16 %v372, %v371
    %v384 = vpack.c.b16 %v374, %v373
    %v385 = vpack.c.b16 %v376, %v375
    %v386 = vpack.c.b16 %v378, %v377
    %395 = vmatprep.subr.bf16.mxu0 0
    %396 = vmatpush1.bf16.msra.mxu0 %v379
    %397 = vmatprep.subr.bf16.mxu0 0
    %398 = vmatpush1.bf16.msra.mxu0 %v380
    %399 = vmatprep.subr.bf16.mxu0 0
    %400 = vmatpush1.bf16.msra.mxu0 %v381
    %401 = vmatprep.subr.bf16.mxu0 0
    %402 = vmatpush1.bf16.msra.mxu0 %v382
    %403 = vmatprep.subr.bf16.mxu0 0
    %404 = vmatpush1.bf16.msra.mxu0 %v383
    %405 = vmatprep.subr.bf16.mxu0 0
    %406 = vmatpush1.bf16.msra.mxu0 %v384
    %407 = vmatprep.subr.bf16.mxu0 0
    %408 = vmatpush1.bf16.msra.mxu0 %v385
    %409 = vmatprep.subr.bf16.mxu0 0
    %410 = vmatpush1.bf16.msra.mxu0 %v386
    %411 = vmatprep.subr.bf16.mxu0 0
    %412 = vmatpush1.bf16.msra.mxu0 0
    %413 = vmatprep.subr.bf16.mxu0 0
    %414 = vmatpush1.bf16.msra.mxu0 0
    %415 = vmatprep.subr.bf16.mxu0 0
    %416 = vmatpush1.bf16.msra.mxu0 0
    %417 = vmatprep.subr.bf16.mxu0 0
    %418 = vmatpush1.bf16.msra.mxu0 0
    %419 = vmatprep.subr.bf16.mxu0 0
    %420 = vmatpush1.bf16.msra.mxu0 0
    %421 = vmatprep.subr.bf16.mxu0 0
    %422 = vmatpush1.bf16.msra.mxu0 0
    %423 = vmatprep.subr.bf16.mxu0 0
    %424 = vmatpush1.bf16.msra.mxu0 0
    %425 = vmatprep.subr.bf16.mxu0 0
    %426 = vmatpush1.bf16.msra.mxu0 0
    %427 = vmatprep.mubr.bf16.mxu0 0
    %428 = vmatmul.mubr.bf16.gmra.mrb[0].mxu0 %v324
    %v429 = vpop.f32.mrb[0].mxu0
    %v430 = vadd.f32 %v345, %v429
    %v431 = vpop.f32.mrb[0].mxu0
    %v432 = vpop.f32.mrb[0].mxu0
    %v433 = vpop.f32.mrb[0].mxu0
    %434 = vdwg.mxu0
    %v435 = vmax.f32 %v430, 0.0
    %v436 = vpack.c.bf16 %v435, %v435
    %v437 = vld [vmem:[#allocation10] sm:$0xf]
    %v438 = vld [vmem:[#allocation10 + $0x4] sm:$0xf]
    %v439 = vld [vmem:[#allocation10 + $0x8] sm:$0xf]
    %v440 = vld [vmem:[#allocation10 + $0xc] sm:$0xf]
    %v441 = vld [vmem:[#allocation10 + $0x10] sm:$0xf]
    %v442 = vld [vmem:[#allocation10 + $0x14] sm:$0xf]
    %v443 = vld [vmem:[#allocation10 + $0x18] sm:$0xf]
    %v444 = vld [vmem:[#allocation10 + $0x1c] sm:$0xf]
    %v445 = vld [vmem:[#allocation10 + $0x20] sm:$0xf]
    %v446 = vld [vmem:[#allocation10 + $0x24] sm:$0xf]
    %v447 = vld [vmem:[#allocation10 + $0x28] sm:$0xf]
    %v448 = vld [vmem:[#allocation10 + $0x2c] sm:$0xf]
    %v449 = vld [vmem:[#allocation10 + $0x30] sm:$0xf]
    %v450 = vld [vmem:[#allocation10 + $0x34] sm:$0xf]
    %v451 = vld [vmem:[#allocation10 + $0x38] sm:$0xf]
    %v452 = vld [vmem:[#allocation10 + $0x3c] sm:$0xf]
    %v454 = vlaneseq
    %v455 = vshrl.u32 %v454, 7
    %v456 = vsub.s32 0, %v455
    %v457 = vrot.slane %v322, %v456
    %v475 = vunpack.c.l.b16 %v437
    %v476 = vunpack.c.l.b16 %v438
    %v477 = vunpack.c.l.b16 %v439
    %v478 = vunpack.c.l.b16 %v440
    %v479 = vunpack.c.l.b16 %v441
    %v480 = vunpack.c.l.b16 %v442
    %v481 = vunpack.c.l.b16 %v443
    %v482 = vunpack.c.l.b16 %v444
    %v483 = vunpack.c.l.b16 %v445
    %v484 = vunpack.c.l.b16 %v446
    %v485 = vunpack.c.l.b16 %v447
    %v486 = vunpack.c.l.b16 %v448
    %v487 = vunpack.c.l.b16 %v449
    %v488 = vunpack.c.l.b16 %v450
    %v489 = vunpack.c.l.b16 %v451
    %v490 = vunpack.c.l.b16 %v452
    %v491 = vpack.c.b16 %v476, %v475
    %v492 = vpack.c.b16 %v478, %v477
    %v493 = vpack.c.b16 %v480, %v479
    %v494 = vpack.c.b16 %v482, %v481
    %v495 = vpack.c.b16 %v484, %v483
    %v496 = vpack.c.b16 %v486, %v485
    %v497 = vpack.c.b16 %v488, %v487
    %v498 = vpack.c.b16 %v490, %v489
    %507 = vmatprep.subr.bf16.mxu0 0
    %508 = vmatpush1.bf16.msra.mxu0 %v491
    %509 = vmatprep.subr.bf16.mxu0 0
    %510 = vmatpush1.bf16.msra.mxu0 %v492
    %511 = vmatprep.subr.bf16.mxu0 0
    %512 = vmatpush1.bf16.msra.mxu0 %v493
    %513 = vmatprep.subr.bf16.mxu0 0
    %514 = vmatpush1.bf16.msra.mxu0 %v494
    %515 = vmatprep.subr.bf16.mxu0 0
    %516 = vmatpush1.bf16.msra.mxu0 %v495
    %517 = vmatprep.subr.bf16.mxu0 0
    %518 = vmatpush1.bf16.msra.mxu0 %v496
    %519 = vmatprep.subr.bf16.mxu0 0
    %520 = vmatpush1.bf16.msra.mxu0 %v497
    %521 = vmatprep.subr.bf16.mxu0 0
    %522 = vmatpush1.bf16.msra.mxu0 %v498
    %523 = vmatprep.subr.bf16.mxu0 0
    %524 = vmatpush1.bf16.msra.mxu0 0
    %525 = vmatprep.subr.bf16.mxu0 0
    %526 = vmatpush1.bf16.msra.mxu0 0
    %527 = vmatprep.subr.bf16.mxu0 0
    %528 = vmatpush1.bf16.msra.mxu0 0
    %529 = vmatprep.subr.bf16.mxu0 0
    %530 = vmatpush1.bf16.msra.mxu0 0
    %531 = vmatprep.subr.bf16.mxu0 0
    %532 = vmatpush1.bf16.msra.mxu0 0
    %533 = vmatprep.subr.bf16.mxu0 0
    %534 = vmatpush1.bf16.msra.mxu0 0
    %535 = vmatprep.subr.bf16.mxu0 0
    %536 = vmatpush1.bf16.msra.mxu0 0
    %537 = vmatprep.subr.bf16.mxu0 0
    %538 = vmatpush1.bf16.msra.mxu0 0
    %539 = vmatprep.mubr.bf16.mxu0 0
    %540 = vmatmul.mubr.bf16.gmra.mrb[0].mxu0 %v436
    %v541 = vpop.f32.mrb[0].mxu0
    %v542 = vadd.f32 %v457, %v541
    %v543 = vpop.f32.mrb[0].mxu0
    %v544 = vpop.f32.mrb[0].mxu0
    %v545 = vpop.f32.mrb[0].mxu0
    %546 = vdwg.mxu0
    %v547 = vmax.f32 %v542, 0.0
    %v548 = vpack.c.bf16 %v547, %v547
    %v549 = vld [vmem:[#allocation11] sm:$0xf]
    %v550 = vld [vmem:[#allocation11 + $0x4] sm:$0xf]
    %v551 = vld [vmem:[#allocation11 + $0x8] sm:$0xf]
    %v552 = vld [vmem:[#allocation11 + $0xc] sm:$0xf]
    %v553 = vld [vmem:[#allocation11 + $0x10] sm:$0xf]
    %v554 = vld [vmem:[#allocation11 + $0x14] sm:$0xf]
    %v555 = vld [vmem:[#allocation11 + $0x18] sm:$0xf]
    %v556 = vld [vmem:[#allocation11 + $0x1c] sm:$0xf]
    %v557 = vld [vmem:[#allocation11 + $0x20] sm:$0xf]
    %v558 = vld [vmem:[#allocation11 + $0x24] sm:$0xf]
    %v559 = vld [vmem:[#allocation11 + $0x28] sm:$0xf]
    %v560 = vld [vmem:[#allocation11 + $0x2c] sm:$0xf]
    %v561 = vld [vmem:[#allocation11 + $0x30] sm:$0xf]
    %v562 = vld [vmem:[#allocation11 + $0x34] sm:$0xf]
    %v563 = vld [vmem:[#allocation11 + $0x38] sm:$0xf]
    %v564 = vld [vmem:[#allocation11 + $0x3c] sm:$0xf]
    %v566 = vlaneseq
    %v567 = vshrl.u32 %v566, 7
    %v568 = vsub.s32 0, %v567
    %v569 = vrot.slane %v323, %v568
    %v587 = vunpack.c.l.b16 %v549
    %v588 = vunpack.c.l.b16 %v550
    %v589 = vunpack.c.l.b16 %v551
    %v590 = vunpack.c.l.b16 %v552
    %v591 = vunpack.c.l.b16 %v553
    %v592 = vunpack.c.l.b16 %v554
    %v593 = vunpack.c.l.b16 %v555
    %v594 = vunpack.c.l.b16 %v556
    %v595 = vunpack.c.l.b16 %v557
    %v596 = vunpack.c.l.b16 %v558
    %v597 = vunpack.c.l.b16 %v559
    %v598 = vunpack.c.l.b16 %v560
    %v599 = vunpack.c.l.b16 %v561
    %v600 = vunpack.c.l.b16 %v562
    %v601 = vunpack.c.l.b16 %v563
    %v602 = vunpack.c.l.b16 %v564
    %v603 = vpack.c.b16 %v588, %v587
    %v604 = vpack.c.b16 %v590, %v589
    %v605 = vpack.c.b16 %v592, %v591
    %v606 = vpack.c.b16 %v594, %v593
    %v607 = vpack.c.b16 %v596, %v595
    %v608 = vpack.c.b16 %v598, %v597
    %v609 = vpack.c.b16 %v600, %v599
    %v610 = vpack.c.b16 %v602, %v601
    %619 = vmatprep.subr.bf16.mxu0 0
    %620 = vmatpush1.bf16.msra.mxu0 %v603
    %621 = vmatprep.subr.bf16.mxu0 0
    %622 = vmatpush1.bf16.msra.mxu0 %v604
    %623 = vmatprep.subr.bf16.mxu0 0
    %624 = vmatpush1.bf16.msra.mxu0 %v605
    %625 = vmatprep.subr.bf16.mxu0 0
    %626 = vmatpush1.bf16.msra.mxu0 %v606
    %627 = vmatprep.subr.bf16.mxu0 0
    %628 = vmatpush1.bf16.msra.mxu0 %v607
    %629 = vmatprep.subr.bf16.mxu0 0
    %630 = vmatpush1.bf16.msra.mxu0 %v608
    %631 = vmatprep.subr.bf16.mxu0 0
    %632 = vmatpush1.bf16.msra.mxu0 %v609
    %633 = vmatprep.subr.bf16.mxu0 0
    %634 = vmatpush1.bf16.msra.mxu0 %v610
    %635 = vmatprep.subr.bf16.mxu0 0
    %636 = vmatpush1.bf16.msra.mxu0 0
    %637 = vmatprep.subr.bf16.mxu0 0
    %638 = vmatpush1.bf16.msra.mxu0 0
    %639 = vmatprep.subr.bf16.mxu0 0
    %640 = vmatpush1.bf16.msra.mxu0 0
    %641 = vmatprep.subr.bf16.mxu0 0
    %642 = vmatpush1.bf16.msra.mxu0 0
    %643 = vmatprep.subr.bf16.mxu0 0
    %644 = vmatpush1.bf16.msra.mxu0 0
    %645 = vmatprep.subr.bf16.mxu0 0
    %646 = vmatpush1.bf16.msra.mxu0 0
    %647 = vmatprep.subr.bf16.mxu0 0
    %648 = vmatpush1.bf16.msra.mxu0 0
    %649 = vmatprep.subr.bf16.mxu0 0
    %650 = vmatpush1.bf16.msra.mxu0 0
    %651 = vmatprep.mubr.bf16.mxu0 0
    %652 = vmatmul.mubr.bf16.gmra.mrb[0].mxu0 %v548
    %v653 = vpop.f32.mrb[0].mxu0
    %v654 = vadd.f32 %v569, %v653
    %v655 = vpop.f32.mrb[0].mxu0
    %v656 = vpop.f32.mrb[0].mxu0
    %v657 = vpop.f32.mrb[0].mxu0
    %658 = vdwg.mxu0
    %659 = vst [vmem:[#allocation13] sm:$0xff] %v654
    // Predicated region
    $region54: #{tpu_custom_call.1} parent=1 // pred_check
      _
    $region55: #{tpu_custom_call.1} parent=1 // pred_check_branch
      %661 = sbr.rel (0) target = $region57
    $region56: #{tpu_custom_call.1} parent=1 // pred_region
      %s663 = ssub.s32 128, 128
      %664 = vsyncadd [#allocation4], %s663
      %s666 = sshll.u32 [#allocation13], 4
      %s667 = int_to_ptr.vmem [resolvable:$true] %s666
      %669 = dma.vmem_to_hbm [thread:$0]  %s667, 128, %s7, [#allocation4]
    $region57: #{tpu_custom_call.1} parent=1 // pred_fallthru
      _
    // Predicated region
    $region58: #{tpu_custom_call.1} parent=1 // pred_check
      _
    $region59: #{tpu_custom_call.1} parent=1 // pred_check_branch
      %671 = sbr.rel (0) target = $region61
    $region60: #{tpu_custom_call.1} parent=1 // pred_region
      %672 = dma.done [#allocation4], 128
    $region61: #{tpu_custom_call.1} parent=1 // pred_fallthru
      _
    %673 = vsyncpa [#allocation3], 1
    %674 = vsyncpa [#allocation6], 1
    %675 = vsyncpa [#allocation9], 1
    %676 = vsyncpa [#allocation12], 1
    %677 = vsyncpa [#allocation4], 1

</llo_original>
